<compile_context>
chip_gen: v5e
topology: v5e:2x2
jax: 0.10.0
libtpu: 0.0.40
codegen_flags: <defaults>
</compile_context>

<pallas_src>
import functools
import math

import jax
import jax.numpy as jnp
from jax.experimental import pallas as pl
from jax.experimental.pallas import tpu as pltpu


def _round_up(n, m):
    return ((n + m - 1) // m) * m


# ----------------------------------------------------------------------------
# Pallas kernel: fused MLP on one batch tile.
#   (x[:,0,:] @ W1 + b1) -> ReLU -> (@ W2 + b2) -> ReLU -> (@ W3p + b3p)
# Weights are bf16 (MXU-native), biases f32, accumulation f32.
# ----------------------------------------------------------------------------
def _mlp_kernel(x_ref, w1_ref, b1_ref, w2_ref, b2_ref, w3_ref, b3_ref, o_ref):
    # x_ref: [TB, S, D]; only sequence position 0 is used (== `...[:, 0, :]`).
    x = x_ref[:, 0, :].astype(jnp.bfloat16)                               # [TB, D]
    h1 = jnp.dot(x, w1_ref[...], preferred_element_type=jnp.float32)     # [TB, 256]
    h1 = jnp.maximum(h1 + b1_ref[...], 0.0)                               # f32 ReLU
    h2 = jnp.dot(h1.astype(jnp.bfloat16), w2_ref[...],
                 preferred_element_type=jnp.float32)                      # [TB, 128]
    h2 = jnp.maximum(h2 + b2_ref[...], 0.0)
    h3 = jnp.dot(h2.astype(jnp.bfloat16), w3_ref[...],
                 preferred_element_type=jnp.float32)                      # [TB, AP]
    o_ref[...] = (h3 + b3_ref[...]).astype(o_ref.dtype)                   # lane-dense store


@functools.partial(jax.jit, static_argnums=(1,))
def _mlp_forward(x, action_dim, w1, b1, w2, b2, w3, b3):
    B, S, D = x.shape
    AP = w3.shape[1]                      # action dim padded to a 128 multiple

    # Round batch up to a sublane multiple so tiles are clean; cheap / no-op for
    # typical batch sizes (multiple of 8).
    Bp = _round_up(max(B, 1), 8)
    if Bp != B:
        x = jnp.pad(x, ((0, Bp - B), (0, 0), (0, 0)))

    TB = min(256, Bp)                     # batch tile (multiple of 8)
    grid = (pl.cdiv(Bp, TB),)

    def _resident(shape):                 # weight/bias: same block every step -> stays in VMEM
        return pl.BlockSpec(shape, lambda i: tuple(0 for _ in shape))

    out = pl.pallas_call(
        _mlp_kernel,
        out_shape=jax.ShapeDtypeStruct((Bp, AP), jnp.float32),
        grid=grid,
        in_specs=[
            pl.BlockSpec((TB, S, D), lambda i: (i, 0, 0)),   # batch-tiled input
            _resident(w1.shape), _resident(b1.shape),
            _resident(w2.shape), _resident(b2.shape),
            _resident(w3.shape), _resident(b3.shape),
        ],
        out_specs=pl.BlockSpec((TB, AP), lambda i: (i, 0)),
        compiler_params=pltpu.CompilerParams(
            dimension_semantics=("parallel",),               # v7x: shard batch over 2 TCs
        ),
    )(x, w1, b1, w2, b2, w3, b3)

    return out[:B, :action_dim]


# ----------------------------------------------------------------------------
# Parameter construction (deterministic, PyTorch nn.Linear-style init)
# ----------------------------------------------------------------------------
def _init_linear(key, fan_in, fan_out):
    # nn.Linear default: U(-1/sqrt(fan_in), 1/sqrt(fan_in)) for weight and bias.
    kw, kb = jax.random.split(key)
    bound = 1.0 / math.sqrt(fan_in)
    # Stored as [fan_in, fan_out] so the kernel does x @ W (PyTorch stores W^T).
    w = jax.random.uniform(kw, (fan_in, fan_out), jnp.float32, -bound, bound)
    b = jax.random.uniform(kb, (1, fan_out), jnp.float32, -bound, bound)
    return w, b


def make_network_params(state_dim, action_dim, seed=0):
    key = jax.random.PRNGKey(seed)
    k1, k2, k3 = jax.random.split(key, 3)
    w1, b1 = _init_linear(k1, state_dim, 256)
    w2, b2 = _init_linear(k2, 256, 128)
    w3, b3 = _init_linear(k3, 128, action_dim)

    # Pad the output layer to a 128-lane multiple (zero columns) so the kernel's
    # output store is lane-dense; the wrapper slices back to `action_dim`.
    ap = _round_up(action_dim, 128)
    w3p = jnp.zeros((128, ap), jnp.float32).at[:, :action_dim].set(w3)
    b3p = jnp.zeros((1, ap), jnp.float32).at[:, :action_dim].set(b3)

    # Weights bf16 (MXU-native, half the DMA), biases f32 (f32 epilogue on v5e).
    online = (w1.astype(jnp.bfloat16), b1,
              w2.astype(jnp.bfloat16), b2,
              w3p.astype(jnp.bfloat16), b3p)
    # target = copy.deepcopy(online) in the PyTorch module -> identical params
    target = tuple(jnp.array(p) for p in online)
    return {"online": online, "target": target}


class Network:
    """Pallas/JAX port of the DDQN Network module (forward pass only)."""

    def __init__(self, state_dim, action_dim, seed=0):
        self.input_shape = state_dim
        self.action_space = action_dim
        self.params = make_network_params(state_dim, action_dim, seed)

    def forward(self, x, model):
        assert model in ("online", "target")
        return _mlp_forward(x.astype(jnp.float32), self.action_space,
                            *self.params[model])

    __call__ = forward


# ----------------------------------------------------------------------------
# Reference (plain JAX, mirrors the kernel's bf16 matmul / f32 epilogue)
# ----------------------------------------------------------------------------
def _reference_forward(x, params, action_dim):
    w1, b1, w2, b2, w3, b3 = params
    x0 = x[:, 0, :].astype(jnp.bfloat16)
    h = jnp.maximum(jnp.dot(x0, w1, preferred_element_type=jnp.float32) + b1, 0.0)
    h = jnp.maximum(jnp.dot(h.astype(jnp.bfloat16), w2,
                            preferred_element_type=jnp.float32) + b2, 0.0)
    out = jnp.dot(h.astype(jnp.bfloat16), w3,
                  preferred_element_type=jnp.float32) + b3
    return out[:, :action_dim]


if __name__ == "__main__":
    B, S = 2, 8          # batch, "sequence" axis (only index 0 is used)
    STATE_DIM = 128      # state_dim (Quoridor board encoding size, synthetic)
    ACTION_DIM = 12      # action_dim (synthetic)

    key = jax.random.PRNGKey(0)
    x = jax.random.normal(key, (B, S, STATE_DIM), dtype=jnp.float32)

    net = Network(STATE_DIM, ACTION_DIM, seed=0)

    out_online = net.forward(x, "online")
    out_target = net.forward(x, "target")
    jax.block_until_ready(out_online)
    jax.block_until_ready(out_target)

    ref = _reference_forward(x, net.params["online"], ACTION_DIM)
    assert out_online.shape == (B, ACTION_DIM)
    assert out_target.shape == (B, ACTION_DIM)
    assert jnp.allclose(out_online, ref, atol=2e-2, rtol=2e-2)
    assert jnp.allclose(out_target, ref, atol=2e-2, rtol=2e-2)

    print("KERNEL_OK")
</pallas_src>

<mosaic_0001>
module attributes {stable_mosaic.version = 11 : i64} {
  func.func @_mlp_kernel(%arg0: i32, %arg1: memref<8x8x128xf32, #tpu.memory_space<vmem>>, %arg2: memref<128x256xbf16, #tpu.memory_space<vmem>>, %arg3: memref<1x256xf32, #tpu.memory_space<vmem>>, %arg4: memref<256x128xbf16, #tpu.memory_space<vmem>>, %arg5: memref<1x128xf32, #tpu.memory_space<vmem>>, %arg6: memref<128x128xbf16, #tpu.memory_space<vmem>>, %arg7: memref<1x128xf32, #tpu.memory_space<vmem>>, %arg8: memref<8x128xf32, #tpu.memory_space<vmem>>) attributes {dimension_semantics = [#tpu.dimension_semantics<parallel>], iteration_bounds = array<i64: 1>, scalar_prefetch = 0 : i64, scratch_operands = 0 : i64, tpu.core_type = #tpu.core_type<tc>, window_params = [{transform_indices = @transform_0, window_bounds = array<i64: 8, 8, 128>}, {pipeline_mode = #tpu.pipeline_mode<synchronous>, transform_indices = @transform_1, window_bounds = array<i64: 128, 256>}, {pipeline_mode = #tpu.pipeline_mode<synchronous>, transform_indices = @transform_2, window_bounds = array<i64: 1, 256>}, {pipeline_mode = #tpu.pipeline_mode<synchronous>, transform_indices = @transform_3, window_bounds = array<i64: 256, 128>}, {pipeline_mode = #tpu.pipeline_mode<synchronous>, transform_indices = @transform_4, window_bounds = array<i64: 1, 128>}, {pipeline_mode = #tpu.pipeline_mode<synchronous>, transform_indices = @transform_5, window_bounds = array<i64: 128, 128>}, {pipeline_mode = #tpu.pipeline_mode<synchronous>, transform_indices = @transform_6, window_bounds = array<i64: 1, 128>}, {transform_indices = @transform_7, window_bounds = array<i64: 8, 128>}]} {
    %c0 = arith.constant 0 : index
    %c0_0 = arith.constant 0 : index
    %c0_1 = arith.constant 0 : index
    %0 = vector.load %arg1[%c0, %c0_0, %c0_1] : memref<8x8x128xf32, #tpu.memory_space<vmem>>, vector<8x1x128xf32>
    %1 = vector.shape_cast %0 : vector<8x1x128xf32> to vector<8x128xf32>
    %2 = arith.truncf %1 : vector<8x128xf32> to vector<8x128xbf16>
    %c0_2 = arith.constant 0 : index
    %c0_3 = arith.constant 0 : index
    %3 = vector.load %arg2[%c0_2, %c0_3] : memref<128x256xbf16, #tpu.memory_space<vmem>>, vector<128x256xbf16>
    %cst = arith.constant dense<0.000000e+00> : vector<8x256xf32>
    %4 = tpu.matmul %2, %3, %cst {dimension_numbers = #tpu.dot_dimension_numbers<[1], [0], [0], [1], [0, 0, 1, 1], [], []>} : vector<8x128xbf16>, vector<128x256xbf16>, vector<8x256xf32> -> vector<8x256xf32>
    %c0_4 = arith.constant 0 : index
    %c0_5 = arith.constant 0 : index
    %5 = vector.load %arg3[%c0_4, %c0_5] : memref<1x256xf32, #tpu.memory_space<vmem>>, vector<1x256xf32>
    %6 = vector.broadcast %5 : vector<1x256xf32> to vector<8x256xf32>
    %7 = arith.addf %4, %6 : vector<8x256xf32>
    %cst_6 = arith.constant 0.000000e+00 : f32
    %8 = vector.broadcast %cst_6 : f32 to vector<8x256xf32>
    %9 = arith.maximumf %7, %8 : vector<8x256xf32>
    %10 = arith.truncf %9 : vector<8x256xf32> to vector<8x256xbf16>
    %c0_7 = arith.constant 0 : index
    %c0_8 = arith.constant 0 : index
    %11 = vector.load %arg4[%c0_7, %c0_8] : memref<256x128xbf16, #tpu.memory_space<vmem>>, vector<256x128xbf16>
    %cst_9 = arith.constant dense<0.000000e+00> : vector<8x128xf32>
    %12 = tpu.matmul %10, %11, %cst_9 {dimension_numbers = #tpu.dot_dimension_numbers<[1], [0], [0], [1], [0, 0, 1, 1], [], []>} : vector<8x256xbf16>, vector<256x128xbf16>, vector<8x128xf32> -> vector<8x128xf32>
    %c0_10 = arith.constant 0 : index
    %c0_11 = arith.constant 0 : index
    %13 = vector.load %arg5[%c0_10, %c0_11] : memref<1x128xf32, #tpu.memory_space<vmem>>, vector<1x128xf32>
    %14 = vector.broadcast %13 : vector<1x128xf32> to vector<8x128xf32>
    %15 = arith.addf %12, %14 : vector<8x128xf32>
    %cst_12 = arith.constant 0.000000e+00 : f32
    %16 = vector.broadcast %cst_12 : f32 to vector<8x128xf32>
    %17 = arith.maximumf %15, %16 : vector<8x128xf32>
    %18 = arith.truncf %17 : vector<8x128xf32> to vector<8x128xbf16>
    %c0_13 = arith.constant 0 : index
    %c0_14 = arith.constant 0 : index
    %19 = vector.load %arg6[%c0_13, %c0_14] : memref<128x128xbf16, #tpu.memory_space<vmem>>, vector<128x128xbf16>
    %cst_15 = arith.constant dense<0.000000e+00> : vector<8x128xf32>
    %20 = tpu.matmul %18, %19, %cst_15 {dimension_numbers = #tpu.dot_dimension_numbers<[1], [0], [0], [1], [0, 0, 1, 1], [], []>} : vector<8x128xbf16>, vector<128x128xbf16>, vector<8x128xf32> -> vector<8x128xf32>
    %c0_16 = arith.constant 0 : index
    %c0_17 = arith.constant 0 : index
    %21 = vector.load %arg7[%c0_16, %c0_17] : memref<1x128xf32, #tpu.memory_space<vmem>>, vector<1x128xf32>
    %22 = vector.broadcast %21 : vector<1x128xf32> to vector<8x128xf32>
    %23 = arith.addf %20, %22 : vector<8x128xf32>
    %c0_18 = arith.constant 0 : index
    %c0_19 = arith.constant 0 : index
    %24 = vector.load %arg8[%c0_18, %c0_19] : memref<8x128xf32, #tpu.memory_space<vmem>>, vector<8x128xf32>
    tpu.vector_store %arg8[%c0_18, %c0_19], %23 {strides = array<i32>} : memref<8x128xf32, #tpu.memory_space<vmem>>, vector<8x128xf32>,
    return
  }
  func.func @transform_0(%arg0: i32) -> (i32, i32, i32) {
    %c0_i32 = arith.constant 0 : i32
    %c0_i32_0 = arith.constant 0 : i32
    %c0_i32_1 = arith.constant 0 : i32
    return %arg0, %c0_i32, %c0_i32_0 : i32, i32, i32
  }
  func.func @transform_1(%arg0: i32) -> (i32, i32) {
    %c0_i32 = arith.constant 0 : i32
    %c0_i32_0 = arith.constant 0 : i32
    %c0_i32_1 = arith.constant 0 : i32
    return %c0_i32, %c0_i32_0 : i32, i32
  }
  func.func @transform_2(%arg0: i32) -> (i32, i32) {
    %c0_i32 = arith.constant 0 : i32
    %c0_i32_0 = arith.constant 0 : i32
    %c0_i32_1 = arith.constant 0 : i32
    return %c0_i32, %c0_i32_0 : i32, i32
  }
  func.func @transform_3(%arg0: i32) -> (i32, i32) {
    %c0_i32 = arith.constant 0 : i32
    %c0_i32_0 = arith.constant 0 : i32
    %c0_i32_1 = arith.constant 0 : i32
    return %c0_i32, %c0_i32_0 : i32, i32
  }
  func.func @transform_4(%arg0: i32) -> (i32, i32) {
    %c0_i32 = arith.constant 0 : i32
    %c0_i32_0 = arith.constant 0 : i32
    %c0_i32_1 = arith.constant 0 : i32
    return %c0_i32, %c0_i32_0 : i32, i32
  }
  func.func @transform_5(%arg0: i32) -> (i32, i32) {
    %c0_i32 = arith.constant 0 : i32
    %c0_i32_0 = arith.constant 0 : i32
    %c0_i32_1 = arith.constant 0 : i32
    return %c0_i32, %c0_i32_0 : i32, i32
  }
  func.func @transform_6(%arg0: i32) -> (i32, i32) {
    %c0_i32 = arith.constant 0 : i32
    %c0_i32_0 = arith.constant 0 : i32
    %c0_i32_1 = arith.constant 0 : i32
    return %c0_i32, %c0_i32_0 : i32, i32
  }
  func.func @transform_7(%arg0: i32) -> (i32, i32) {
    %c0_i32 = arith.constant 0 : i32
    %c0_i32_0 = arith.constant 0 : i32
    return %arg0, %c0_i32 : i32, i32
  }
}

</mosaic_0001>

<llo_original>
// kernel: _mlp_forward.1
$region0: #{_mlp_forward.1}
  #allocation0 [shape = 'u32[]', space=smem, size = 0x4, offset = 0x4, fixed_abs, tag = 'smem constant byte address 0x4 - core index']
  #allocation1 [shape = 'u32[72,128]{1,0:T(1,128)}', space=vmem, size = 0x9000, scoped, tag = 'internal scratch']
  %s0 = inlined_call_operand.vmem [shape: f32[8,8,128], index: 0, kind: input, shape index: {}]
  %s1 = inlined_call_operand.hbm [shape: bf16[128,256], index: 1, kind: input, shape index: {}]
  %s2 = inlined_call_operand.vmem [shape: f32[1,256], index: 2, kind: input, shape index: {}]
  %s3 = inlined_call_operand.hbm [shape: bf16[256,128], index: 3, kind: input, shape index: {}]
  %s4 = inlined_call_operand.vmem [shape: f32[1,128], index: 4, kind: input, shape index: {}]
  %s5 = inlined_call_operand.vmem [shape: bf16[128,128], index: 5, kind: input, shape index: {}]
  %s6 = inlined_call_operand.vmem [shape: f32[1,128], index: 6, kind: input, shape index: {}]
  %s7 = inlined_call_operand.vmem [shape: f32[8,128], index: 7, kind: output, shape index: {}]
  %s8 = sld [smem:[#allocation0]]
  $region46: #{_mlp_forward.1} parent=0
    _
  %s10 = ssub.s32 1, %s8
  %s11 = scalar_select 0, %s10, %s8
  $region1: #{_mlp_forward.1} parent=0
    #allocation2 [shape = 'u8[65536]{0}', space=vmem, size = 0x10000, scoped, tag = 'input window, operand 1, single buffered']
    #allocation3 [shape = 's32[1]{0}', space=sflag, size = 0x4, scoped, tag = 'scoped memory for _mlp_forward.1']
    #allocation4 [shape = 'u8[65536]{0}', space=vmem, size = 0x10000, scoped, tag = 'input window, operand 3, single buffered']
    #allocation5 [shape = 's32[1]{0}', space=sflag, size = 0x4, scoped, tag = 'scoped memory for _mlp_forward.1']
    %12 = vsyncpa [#allocation3], 0
    %13 = vsyncpa [#allocation5], 0
    // Predicated region
    $region2: #{_mlp_forward.1} parent=1 // pred_check
      _
    $region3: #{_mlp_forward.1} parent=1 // pred_check_branch
      %15 = sbr.rel (0) target = $region5
    $region4: #{_mlp_forward.1} parent=1 // pred_region
      _
    $region5: #{_mlp_forward.1} parent=1 // pred_fallthru
      _
    // Predicated region
    $region6: #{_mlp_forward.1} parent=1 // pred_check
      _
    $region7: #{_mlp_forward.1} parent=1 // pred_check_branch
      %17 = sbr.rel (0) target = $region9
    $region8: #{_mlp_forward.1} parent=1 // pred_region
      %19 = vsyncadd [#allocation3], 0
      %s20 = sshll.u32 %s1, 4
      %s21 = int_to_ptr.hbm [resolvable:$true] %s20
      %s22 = sshll.u32 [#allocation2], 4
      %s23 = int_to_ptr.vmem [resolvable:$true] %s22
      %28 = dma.hbm_to_vmem [thread:$0]  %s21, 2048, %s23, [#allocation3], 128, 128, 8
    $region9: #{_mlp_forward.1} parent=1 // pred_fallthru
      _
    // Predicated region
    $region10: #{_mlp_forward.1} parent=1 // pred_check
      _
    $region11: #{_mlp_forward.1} parent=1 // pred_check_branch
      %30 = sbr.rel (0) target = $region13
    $region12: #{_mlp_forward.1} parent=1 // pred_region
      _
    $region13: #{_mlp_forward.1} parent=1 // pred_fallthru
      _
    // Predicated region
    $region14: #{_mlp_forward.1} parent=1 // pred_check
      _
    $region15: #{_mlp_forward.1} parent=1 // pred_check_branch
      %32 = sbr.rel (0) target = $region17
    $region16: #{_mlp_forward.1} parent=1 // pred_region
      %34 = vsyncadd [#allocation5], 0
      %s35 = sshll.u32 %s3, 4
      %s36 = int_to_ptr.hbm [resolvable:$true] %s35
      %s37 = sshll.u32 [#allocation4], 4
      %s38 = int_to_ptr.vmem [resolvable:$true] %s37
      %43 = dma.hbm_to_vmem [thread:$0]  %s36, 2048, %s38, [#allocation5], 64, 64, 4
    $region17: #{_mlp_forward.1} parent=1 // pred_fallthru
      _
    // Predicated region
    $region18: #{_mlp_forward.1} parent=1 // pred_check
      _
    $region19: #{_mlp_forward.1} parent=1 // pred_check_branch
      %45 = sbr.rel (0) target = $region21
    $region20: #{_mlp_forward.1} parent=1 // pred_region
      _
    $region21: #{_mlp_forward.1} parent=1 // pred_fallthru
      _
    // Predicated region
    $region22: #{_mlp_forward.1} parent=1 // pred_check
      _
    $region23: #{_mlp_forward.1} parent=1 // pred_check_branch
      %47 = sbr.rel (0) target = $region25
    $region24: #{_mlp_forward.1} parent=1 // pred_region
      _
    $region25: #{_mlp_forward.1} parent=1 // pred_fallthru
      _
    // Predicated region
    $region26: #{_mlp_forward.1} parent=1 // pred_check
      _
    $region27: #{_mlp_forward.1} parent=1 // pred_check_branch
      %49 = sbr.rel (0) target = $region29
    $region28: #{_mlp_forward.1} parent=1 // pred_region
      _
    $region29: #{_mlp_forward.1} parent=1 // pred_fallthru
      _
    // Predicated region
    $region30: #{_mlp_forward.1} parent=1 // pred_check
      _
    $region31: #{_mlp_forward.1} parent=1 // pred_check_branch
      %51 = sbr.rel (0) target = $region33
    $region32: #{_mlp_forward.1} parent=1 // pred_region
      %53 = dma.done [#allocation3], 2048
    $region33: #{_mlp_forward.1} parent=1 // pred_fallthru
      _
    // Predicated region
    $region34: #{_mlp_forward.1} parent=1 // pred_check
      _
    $region35: #{_mlp_forward.1} parent=1 // pred_check_branch
      %55 = sbr.rel (0) target = $region37
    $region36: #{_mlp_forward.1} parent=1 // pred_region
      %57 = dma.done [#allocation5], 2048
    $region37: #{_mlp_forward.1} parent=1 // pred_fallthru
      _
    %v58 = vld [vmem:[%s0] sm:$0x1]
    %v59 = vld [vmem:[%s0 + $0x8] sm:$0x1]
    %v60 = vld [vmem:[%s0 + $0x10] sm:$0x1]
    %v61 = vld [vmem:[%s0 + $0x18] sm:$0x1]
    %v62 = vld [vmem:[%s0 + $0x20] sm:$0x1]
    %v63 = vld [vmem:[%s0 + $0x28] sm:$0x1]
    %v64 = vld [vmem:[%s0 + $0x30] sm:$0x1]
    %v65 = vld [vmem:[%s0 + $0x38] sm:$0x1]
    %v66 = vpack.c.bf16 %v58, %v58
    %v67 = vpack.c.bf16 %v59, %v59
    %v68 = vpack.c.bf16 %v60, %v60
    %v69 = vpack.c.bf16 %v61, %v61
    %v70 = vpack.c.bf16 %v62, %v62
    %v71 = vpack.c.bf16 %v63, %v63
    %v72 = vpack.c.bf16 %v64, %v64
    %v73 = vpack.c.bf16 %v65, %v65
    %v74 = vld [vmem:[#allocation2] sm:$0xff]
    %v75 = vld [vmem:[#allocation2 + $0x8] sm:$0xff]
    %v76 = vld [vmem:[#allocation2 + $0x10] sm:$0xff]
    %v77 = vld [vmem:[#allocation2 + $0x18] sm:$0xff]
    %v78 = vld [vmem:[#allocation2 + $0x20] sm:$0xff]
    %v79 = vld [vmem:[#allocation2 + $0x28] sm:$0xff]
    %v80 = vld [vmem:[#allocation2 + $0x30] sm:$0xff]
    %v81 = vld [vmem:[#allocation2 + $0x38] sm:$0xff]
    %v82 = vld [vmem:[#allocation2 + $0x40] sm:$0xff]
    %v83 = vld [vmem:[#allocation2 + $0x48] sm:$0xff]
    %v84 = vld [vmem:[#allocation2 + $0x50] sm:$0xff]
    %v85 = vld [vmem:[#allocation2 + $0x58] sm:$0xff]
    %v86 = vld [vmem:[#allocation2 + $0x60] sm:$0xff]
    %v87 = vld [vmem:[#allocation2 + $0x68] sm:$0xff]
    %v88 = vld [vmem:[#allocation2 + $0x70] sm:$0xff]
    %v89 = vld [vmem:[#allocation2 + $0x78] sm:$0xff]
    %v90 = vld [vmem:[%s2] sm:$0x3]
    %v92 = vperm.slane %v90, 0
    %v93 = vperm.slane %v90, 1
    %v104 = vunpack.c.l.b16 %v66
    %v105 = vunpack.c.l.b16 %v67
    %v106 = vunpack.c.l.b16 %v68
    %v107 = vunpack.c.l.b16 %v69
    %v108 = vunpack.c.l.b16 %v70
    %v109 = vunpack.c.l.b16 %v71
    %v110 = vunpack.c.l.b16 %v72
    %v111 = vunpack.c.l.b16 %v73
    %v112 = vrot.slane %v105, 7
    %vm113 = vcmask 1041409
    %v114 = vsel %vm113, %v112, %v104
    %v115 = vrot.slane %v106, 6
    %vm116 = vcmask 1042434
    %v117 = vsel %vm116, %v115, %v114
    %v118 = vrot.slane %v107, 5
    %vm119 = vcmask 1043459
    %v120 = vsel %vm119, %v118, %v117
    %v121 = vrot.slane %v108, 4
    %vm122 = vcmask 1044484
    %v123 = vsel %vm122, %v121, %v120
    %v124 = vrot.slane %v109, 3
    %vm125 = vcmask 1045509
    %v126 = vsel %vm125, %v124, %v123
    %v127 = vrot.slane %v110, 2
    %vm128 = vcmask 1046534
    %v129 = vsel %vm128, %v127, %v126
    %v130 = vrot.slane %v111, 1
    %vm131 = vcmask 1047559
    %v132 = vsel %vm131, %v130, %v129
    %v133 = vpack.c.b16 %v132, %v132
    %v151 = vunpack.c.l.b16 %v74
    %v152 = vunpack.c.h.b16 %v74
    %v153 = vunpack.c.l.b16 %v75
    %v154 = vunpack.c.h.b16 %v75
    %v155 = vunpack.c.l.b16 %v76
    %v156 = vunpack.c.h.b16 %v76
    %v157 = vunpack.c.l.b16 %v77
    %v158 = vunpack.c.h.b16 %v77
    %v159 = vunpack.c.l.b16 %v78
    %v160 = vunpack.c.h.b16 %v78
    %v161 = vunpack.c.l.b16 %v79
    %v162 = vunpack.c.h.b16 %v79
    %v163 = vunpack.c.l.b16 %v80
    %v164 = vunpack.c.h.b16 %v80
    %v165 = vunpack.c.l.b16 %v81
    %v166 = vunpack.c.h.b16 %v81
    %v167 = vunpack.c.l.b16 %v82
    %v168 = vunpack.c.h.b16 %v82
    %v169 = vunpack.c.l.b16 %v83
    %v170 = vunpack.c.h.b16 %v83
    %v171 = vunpack.c.l.b16 %v84
    %v172 = vunpack.c.h.b16 %v84
    %v173 = vunpack.c.l.b16 %v85
    %v174 = vunpack.c.h.b16 %v85
    %v175 = vunpack.c.l.b16 %v86
    %v176 = vunpack.c.h.b16 %v86
    %v177 = vunpack.c.l.b16 %v87
    %v178 = vunpack.c.h.b16 %v87
    %v179 = vunpack.c.l.b16 %v88
    %v180 = vunpack.c.h.b16 %v88
    %v181 = vunpack.c.l.b16 %v89
    %v182 = vunpack.c.h.b16 %v89
    %v183 = vpack.c.b16 %v153, %v151
    %v184 = vpack.c.b16 %v154, %v152
    %v185 = vpack.c.b16 %v157, %v155
    %v186 = vpack.c.b16 %v158, %v156
    %v187 = vpack.c.b16 %v161, %v159
    %v188 = vpack.c.b16 %v162, %v160
    %v189 = vpack.c.b16 %v165, %v163
    %v190 = vpack.c.b16 %v166, %v164
    %v191 = vpack.c.b16 %v169, %v167
    %v192 = vpack.c.b16 %v170, %v168
    %v193 = vpack.c.b16 %v173, %v171
    %v194 = vpack.c.b16 %v174, %v172
    %v195 = vpack.c.b16 %v177, %v175
    %v196 = vpack.c.b16 %v178, %v176
    %v197 = vpack.c.b16 %v181, %v179
    %v198 = vpack.c.b16 %v182, %v180
    %215 = vmatpush.bf16.msra.mxu0 %v197
    %216 = vmatpush.bf16.msra.mxu0 %v195
    %217 = vmatpush.bf16.msra.mxu0 %v193
    %218 = vmatpush.bf16.msra.mxu0 %v191
    %219 = vmatpush.bf16.msra.mxu0 %v189
    %220 = vmatpush.bf16.msra.mxu0 %v187
    %221 = vmatpush.bf16.msra.mxu0 %v185
    %222 = vmatpush.bf16.msra.mxu0 %v183
    %223 = vmatmul.bf16.gmra.mxu0 %v133
    %v224 = vpop.f32.mrf.mxu0
    %v225 = vadd.f32 %v92, %v224
    %v226 = vpop.f32.mrf.mxu0
    %227 = vdwg.mxu0
    %228 = vmatpush.bf16.msra.mxu0 %v198
    %229 = vmatpush.bf16.msra.mxu0 %v196
    %230 = vmatpush.bf16.msra.mxu0 %v194
    %231 = vmatpush.bf16.msra.mxu0 %v192
    %232 = vmatpush.bf16.msra.mxu0 %v190
    %233 = vmatpush.bf16.msra.mxu0 %v188
    %234 = vmatpush.bf16.msra.mxu0 %v186
    %235 = vmatpush.bf16.msra.mxu0 %v184
    %236 = vmatmul.bf16.gmra.mxu0 %v133
    %v237 = vpop.f32.mrf.mxu0
    %v238 = vadd.f32 %v93, %v237
    %v239 = vpop.f32.mrf.mxu0
    %240 = vdwg.mxu0
    %v241 = vmax.f32 %v225, 0.0
    %v242 = vmax.f32 %v238, 0.0
    %v243 = vpack.c.bf16 %v241, %v241
    %v244 = vpack.c.bf16 %v242, %v242
    %v245 = vld [vmem:[#allocation4] sm:$0xf]
    %v246 = vld [vmem:[#allocation4 + $0x4] sm:$0xf]
    %v247 = vld [vmem:[#allocation4 + $0x8] sm:$0xf]
    %v248 = vld [vmem:[#allocation4 + $0xc] sm:$0xf]
    %v249 = vld [vmem:[#allocation4 + $0x10] sm:$0xf]
    %v250 = vld [vmem:[#allocation4 + $0x14] sm:$0xf]
    %v251 = vld [vmem:[#allocation4 + $0x18] sm:$0xf]
    %v252 = vld [vmem:[#allocation4 + $0x1c] sm:$0xf]
    %v253 = vld [vmem:[#allocation4 + $0x20] sm:$0xf]
    %v254 = vld [vmem:[#allocation4 + $0x24] sm:$0xf]
    %v255 = vld [vmem:[#allocation4 + $0x28] sm:$0xf]
    %v256 = vld [vmem:[#allocation4 + $0x2c] sm:$0xf]
    %v257 = vld [vmem:[#allocation4 + $0x30] sm:$0xf]
    %v258 = vld [vmem:[#allocation4 + $0x34] sm:$0xf]
    %v259 = vld [vmem:[#allocation4 + $0x38] sm:$0xf]
    %v260 = vld [vmem:[#allocation4 + $0x3c] sm:$0xf]
    %v261 = vld [vmem:[#allocation4 + $0x40] sm:$0xf]
    %v262 = vld [vmem:[#allocation4 + $0x44] sm:$0xf]
    %v263 = vld [vmem:[#allocation4 + $0x48] sm:$0xf]
    %v264 = vld [vmem:[#allocation4 + $0x4c] sm:$0xf]
    %v265 = vld [vmem:[#allocation4 + $0x50] sm:$0xf]
    %v266 = vld [vmem:[#allocation4 + $0x54] sm:$0xf]
    %v267 = vld [vmem:[#allocation4 + $0x58] sm:$0xf]
    %v268 = vld [vmem:[#allocation4 + $0x5c] sm:$0xf]
    %v269 = vld [vmem:[#allocation4 + $0x60] sm:$0xf]
    %v270 = vld [vmem:[#allocation4 + $0x64] sm:$0xf]
    %v271 = vld [vmem:[#allocation4 + $0x68] sm:$0xf]
    %v272 = vld [vmem:[#allocation4 + $0x6c] sm:$0xf]
    %v273 = vld [vmem:[#allocation4 + $0x70] sm:$0xf]
    %v274 = vld [vmem:[#allocation4 + $0x74] sm:$0xf]
    %v275 = vld [vmem:[#allocation4 + $0x78] sm:$0xf]
    %v276 = vld [vmem:[#allocation4 + $0x7c] sm:$0xf]
    %v277 = vld [vmem:[%s4] sm:$0x1]
    %v279 = vperm.slane %v277, 0
    %v313 = vunpack.c.l.b16 %v245
    %v314 = vunpack.c.l.b16 %v246
    %v315 = vunpack.c.l.b16 %v247
    %v316 = vunpack.c.l.b16 %v248
    %v317 = vunpack.c.l.b16 %v249
    %v318 = vunpack.c.l.b16 %v250
    %v319 = vunpack.c.l.b16 %v251
    %v320 = vunpack.c.l.b16 %v252
    %v321 = vunpack.c.l.b16 %v253
    %v322 = vunpack.c.l.b16 %v254
    %v323 = vunpack.c.l.b16 %v255
    %v324 = vunpack.c.l.b16 %v256
    %v325 = vunpack.c.l.b16 %v257
    %v326 = vunpack.c.l.b16 %v258
    %v327 = vunpack.c.l.b16 %v259
    %v328 = vunpack.c.l.b16 %v260
    %v329 = vunpack.c.l.b16 %v261
    %v330 = vunpack.c.l.b16 %v262
    %v331 = vunpack.c.l.b16 %v263
    %v332 = vunpack.c.l.b16 %v264
    %v333 = vunpack.c.l.b16 %v265
    %v334 = vunpack.c.l.b16 %v266
    %v335 = vunpack.c.l.b16 %v267
    %v336 = vunpack.c.l.b16 %v268
    %v337 = vunpack.c.l.b16 %v269
    %v338 = vunpack.c.l.b16 %v270
    %v339 = vunpack.c.l.b16 %v271
    %v340 = vunpack.c.l.b16 %v272
    %v341 = vunpack.c.l.b16 %v273
    %v342 = vunpack.c.l.b16 %v274
    %v343 = vunpack.c.l.b16 %v275
    %v344 = vunpack.c.l.b16 %v276
    %v345 = vpack.c.b16 %v314, %v313
    %v346 = vpack.c.b16 %v316, %v315
    %v347 = vpack.c.b16 %v318, %v317
    %v348 = vpack.c.b16 %v320, %v319
    %v349 = vpack.c.b16 %v322, %v321
    %v350 = vpack.c.b16 %v324, %v323
    %v351 = vpack.c.b16 %v326, %v325
    %v352 = vpack.c.b16 %v328, %v327
    %v353 = vpack.c.b16 %v330, %v329
    %v354 = vpack.c.b16 %v332, %v331
    %v355 = vpack.c.b16 %v334, %v333
    %v356 = vpack.c.b16 %v336, %v335
    %v357 = vpack.c.b16 %v338, %v337
    %v358 = vpack.c.b16 %v340, %v339
    %v359 = vpack.c.b16 %v342, %v341
    %v360 = vpack.c.b16 %v344, %v343
    %377 = vmatpush.bf16.msra.mxu0 %v352
    %378 = vmatpush.bf16.msra.mxu0 %v351
    %379 = vmatpush.bf16.msra.mxu0 %v350
    %380 = vmatpush.bf16.msra.mxu0 %v349
    %381 = vmatpush.bf16.msra.mxu0 %v348
    %382 = vmatpush.bf16.msra.mxu0 %v347
    %383 = vmatpush.bf16.msra.mxu0 %v346
    %384 = vmatpush.bf16.msra.mxu0 %v345
    %385 = vmatmul.bf16.gmra.mxu0 %v243
    %v386 = vpop.f32.mrf.mxu0
    %v387 = vadd.f32 %v279, %v386
    %v388 = vpop.f32.mrf.mxu0
    %389 = vdwg.mxu0
    %390 = vmatpush.bf16.msra.mxu0 %v360
    %391 = vmatpush.bf16.msra.mxu0 %v359
    %392 = vmatpush.bf16.msra.mxu0 %v358
    %393 = vmatpush.bf16.msra.mxu0 %v357
    %394 = vmatpush.bf16.msra.mxu0 %v356
    %395 = vmatpush.bf16.msra.mxu0 %v355
    %396 = vmatpush.bf16.msra.mxu0 %v354
    %397 = vmatpush.bf16.msra.mxu0 %v353
    %398 = vmatmul.bf16.gmra.mxu0 %v244
    %v399 = vpop.f32.mrf.mxu0
    %v400 = vadd.f32 %v387, %v399
    %v401 = vpop.f32.mrf.mxu0
    %402 = vdwg.mxu0
    %v403 = vmax.f32 %v400, 0.0
    %v404 = vpack.c.bf16 %v403, %v403
    %v405 = vld [vmem:[%s5] sm:$0xf]
    %v406 = vld [vmem:[%s5 + $0x4] sm:$0xf]
    %v407 = vld [vmem:[%s5 + $0x8] sm:$0xf]
    %v408 = vld [vmem:[%s5 + $0xc] sm:$0xf]
    %v409 = vld [vmem:[%s5 + $0x10] sm:$0xf]
    %v410 = vld [vmem:[%s5 + $0x14] sm:$0xf]
    %v411 = vld [vmem:[%s5 + $0x18] sm:$0xf]
    %v412 = vld [vmem:[%s5 + $0x1c] sm:$0xf]
    %v413 = vld [vmem:[%s5 + $0x20] sm:$0xf]
    %v414 = vld [vmem:[%s5 + $0x24] sm:$0xf]
    %v415 = vld [vmem:[%s5 + $0x28] sm:$0xf]
    %v416 = vld [vmem:[%s5 + $0x2c] sm:$0xf]
    %v417 = vld [vmem:[%s5 + $0x30] sm:$0xf]
    %v418 = vld [vmem:[%s5 + $0x34] sm:$0xf]
    %v419 = vld [vmem:[%s5 + $0x38] sm:$0xf]
    %v420 = vld [vmem:[%s5 + $0x3c] sm:$0xf]
    %v421 = vld [vmem:[%s6] sm:$0x1]
    %v423 = vperm.slane %v421, 0
    %v441 = vunpack.c.l.b16 %v405
    %v442 = vunpack.c.l.b16 %v406
    %v443 = vunpack.c.l.b16 %v407
    %v444 = vunpack.c.l.b16 %v408
    %v445 = vunpack.c.l.b16 %v409
    %v446 = vunpack.c.l.b16 %v410
    %v447 = vunpack.c.l.b16 %v411
    %v448 = vunpack.c.l.b16 %v412
    %v449 = vunpack.c.l.b16 %v413
    %v450 = vunpack.c.l.b16 %v414
    %v451 = vunpack.c.l.b16 %v415
    %v452 = vunpack.c.l.b16 %v416
    %v453 = vunpack.c.l.b16 %v417
    %v454 = vunpack.c.l.b16 %v418
    %v455 = vunpack.c.l.b16 %v419
    %v456 = vunpack.c.l.b16 %v420
    %v457 = vpack.c.b16 %v442, %v441
    %v458 = vpack.c.b16 %v444, %v443
    %v459 = vpack.c.b16 %v446, %v445
    %v460 = vpack.c.b16 %v448, %v447
    %v461 = vpack.c.b16 %v450, %v449
    %v462 = vpack.c.b16 %v452, %v451
    %v463 = vpack.c.b16 %v454, %v453
    %v464 = vpack.c.b16 %v456, %v455
    %473 = vmatpush.bf16.msra.mxu0 %v464
    %474 = vmatpush.bf16.msra.mxu0 %v463
    %475 = vmatpush.bf16.msra.mxu0 %v462
    %476 = vmatpush.bf16.msra.mxu0 %v461
    %477 = vmatpush.bf16.msra.mxu0 %v460
    %478 = vmatpush.bf16.msra.mxu0 %v459
    %479 = vmatpush.bf16.msra.mxu0 %v458
    %480 = vmatpush.bf16.msra.mxu0 %v457
    %481 = vmatmul.bf16.gmra.mxu0 %v404
    %v482 = vpop.f32.mrf.mxu0
    %v483 = vadd.f32 %v423, %v482
    %v484 = vpop.f32.mrf.mxu0
    %485 = vdwg.mxu0
    %486 = vst [vmem:[%s7] sm:$0xff] %v483
    // Predicated region
    $region38: #{_mlp_forward.1} parent=1 // pred_check
      _
    $region39: #{_mlp_forward.1} parent=1 // pred_check_branch
      %488 = sbr.rel (0) target = $region41
    $region40: #{_mlp_forward.1} parent=1 // pred_region
      _
    $region41: #{_mlp_forward.1} parent=1 // pred_fallthru
      _
    // Predicated region
    $region42: #{_mlp_forward.1} parent=1 // pred_check
      _
    $region43: #{_mlp_forward.1} parent=1 // pred_check_branch
      %490 = sbr.rel (0) target = $region45
    $region44: #{_mlp_forward.1} parent=1 // pred_region
      _
    $region45: #{_mlp_forward.1} parent=1 // pred_fallthru
      _
    %491 = vsyncpa [#allocation3], 1
    %492 = vsyncpa [#allocation5], 1

</llo_original>
